<compile_context>
chip_gen: v7x
topology: tpu7x:2x2x1
jax: 0.10.0
libtpu: 0.0.40
codegen_flags: <defaults>
</compile_context>

<pallas_src>
import jax
import jax.numpy as jnp
import numpy as np
from jax import lax
from jax.experimental import pallas as pl
from jax.experimental.pallas import tpu as pltpu

_LANE = 128


def _round_up(x, m):
    return ((x + m - 1) // m) * m


def _transition_kernel(scale_ref, shift_ref, w_ref, x_ref, o_ref):
    # scale_ref/shift_ref: (C_in, 1) f32 folded-BN parameters
    # w_ref:               (C_out, C_in) bf16 1x1 conv weight (resident)
    # x_ref:               (TB, C_in, TS) lane-dense input tile
    # o_ref:               (TB, C_out, TS) output tile
    scale = scale_ref[...]          # hoisted out of the batch loop
    shift = shift_ref[...]
    w = w_ref[...]
    tb = x_ref.shape[0]             # static
    for b in range(tb):             # static unroll over the batch tile
        x = x_ref[b].astype(jnp.float32)                    # (C_in, TS)
        y = jnp.maximum(x * scale + shift, 0.0)             # BN + ReLU (VPU)
        y = y.astype(jnp.bfloat16)                           # single-pass MXU feed
        out = jnp.dot(w, y, preferred_element_type=jnp.float32)   # (C_out, TS)
        o_ref[b] = out.astype(o_ref.dtype)


def _choose_tiles(N, C_in, C_out, HW, x_itemsize, o_itemsize, w_itemsize):
    """Pick (spatial tile, batch tile, padded HW) from a VMEM byte budget."""
    # Conservative total pipelined footprint; fits v5e/v6e/v7x scoped VMEM.
    total_budget = 12 * 1024 * 1024
    # Resident double-buffered params: bf16 weight + lane-padded scale/shift.
    param_foot = (2 * C_out * C_in * w_itemsize
                  + 2 * 2 * _round_up(C_in, 8) * _LANE * 4)
    tile_budget = max(total_budget - param_foot, 4 * 1024 * 1024)
    per_step_budget = tile_budget // 2            # double buffering
    per_lane = C_in * x_itemsize + C_out * o_itemsize
    max_lanes = max(per_step_budget // per_lane, _LANE)
    max_lanes = (max_lanes // _LANE) * _LANE

    hw128 = _round_up(HW, _LANE)
    ts = min(max_lanes, hw128)                    # multiple of 128
    hw_pad = _round_up(HW, ts)                    # multiple of ts (and 128)
    tb = int(min(N, max(1, max_lanes // ts), 8))  # cap static unroll
    return ts, tb, hw_pad


def real_transition_dense(x, gamma, beta, running_mean, running_var, weight,
                          *, eps=1e-4):
    """Fused BatchNorm2d(eval) + ReLU + Conv2d(1x1, bias=False).

    x: (N, C_in, H, W); weight: (C_out, C_in) or (C_out, C_in, 1, 1);
    gamma/beta/running_mean/running_var: (C_in,).
    """
    N, C_in, H, W = x.shape
    if weight.ndim == 4:
        weight = weight.reshape(weight.shape[0], weight.shape[1])
    C_out = weight.shape[0]
    HW = H * W

    # Fold BatchNorm (inference statistics) into per-channel scale/shift.
    # TODO(synk): training-mode BN (batch statistics + running-stat updates)
    # would need an extra cross-(N,H,W) reduction pass; eval semantics only.
    f32 = jnp.float32
    scale = gamma.astype(f32) / jnp.sqrt(running_var.astype(f32) + eps)
    shift = beta.astype(f32) - running_mean.astype(f32) * scale
    scale = scale.reshape(C_in, 1)
    shift = shift.reshape(C_in, 1)

    # Pre-cast the weight to bf16 (single-pass MXU, half the HBM/VMEM bytes).
    w_bf16 = weight.astype(jnp.bfloat16)

    out_dtype = x.dtype
    ts, tb, hw_pad = _choose_tiles(
        N, C_in, C_out, HW,
        jnp.dtype(x.dtype).itemsize, jnp.dtype(out_dtype).itemsize,
        jnp.dtype(jnp.bfloat16).itemsize)

    # Lane-dense layout: flatten spatial dims onto the 128-lane axis, padding
    # up to a multiple of the spatial tile so every store is full-width.
    x_flat = x.reshape(N, C_in, HW)
    if hw_pad > HW:
        x_flat = jnp.pad(x_flat, ((0, 0), (0, 0), (0, hw_pad - HW)))

    grid = (pl.cdiv(N, tb), hw_pad // ts)

    out_flat = pl.pallas_call(
        _transition_kernel,
        out_shape=jax.ShapeDtypeStruct((N, C_out, hw_pad), out_dtype),
        grid_spec=pltpu.PrefetchScalarGridSpec(
            num_scalar_prefetch=0,
            grid=grid,
            in_specs=[
                pl.BlockSpec((C_in, 1), lambda n, t: (0, 0)),       # scale
                pl.BlockSpec((C_in, 1), lambda n, t: (0, 0)),       # shift
                pl.BlockSpec((C_out, C_in), lambda n, t: (0, 0)),   # weight
                pl.BlockSpec((tb, C_in, ts), lambda n, t: (n, 0, t)),
            ],
            out_specs=pl.BlockSpec((tb, C_out, ts), lambda n, t: (n, 0, t)),
        ),
        compiler_params=pltpu.CompilerParams(
            dimension_semantics=("parallel", "parallel"),
            vmem_limit_bytes=32 * 1024 * 1024),
    )(scale, shift, w_bf16, x_flat)

    return out_flat[:, :, :HW].reshape(N, C_out, H, W)


def _reference(x, gamma, beta, running_mean, running_var, weight, *, eps=1e-4):
    """Pure-JAX f32 reference mirroring the PyTorch forward (eval mode)."""
    scale = gamma / jnp.sqrt(running_var + eps)
    shift = beta - running_mean * scale
    y = x * scale[None, :, None, None] + shift[None, :, None, None]
    y = jnp.maximum(y, 0.0)
    return jnp.einsum('oc,nchw->nohw', weight, y,
                      precision=lax.Precision.HIGHEST)


if __name__ == "__main__":
    key = jax.random.PRNGKey(0)
    N, C_in, C_out, H, W = 2, 32, 16, 16, 16
    ks = jax.random.split(key, 6)
    x = jax.random.normal(ks[0], (N, C_in, H, W), dtype=jnp.float32)
    gamma = 1.0 + 0.1 * jax.random.normal(ks[1], (C_in,), dtype=jnp.float32)
    beta = 0.1 * jax.random.normal(ks[2], (C_in,), dtype=jnp.float32)
    running_mean = 0.1 * jax.random.normal(ks[3], (C_in,), dtype=jnp.float32)
    running_var = jax.nn.softplus(
        jax.random.normal(ks[4], (C_in,), dtype=jnp.float32)) + 0.5
    weight = jax.random.normal(ks[5], (C_out, C_in), dtype=jnp.float32) / np.sqrt(C_in)

    out = real_transition_dense(x, gamma, beta, running_mean, running_var, weight)
    out = jax.block_until_ready(out)

    ref = _reference(x, gamma, beta, running_mean, running_var, weight)
    # bf16 MXU inputs with f32 accumulation -> looser tolerance vs f32 reference.
    np.testing.assert_allclose(np.asarray(out), np.asarray(ref),
                               atol=5e-2, rtol=5e-2)
    print("KERNEL_OK")
</pallas_src>

<mosaic_0001>
module attributes {stable_mosaic.version = 11 : i64} {
  func.func @_transition_kernel(%arg0: i32, %arg1: i32, %arg2: memref<32x1xf32, #tpu.memory_space<vmem>>, %arg3: memref<32x1xf32, #tpu.memory_space<vmem>>, %arg4: memref<16x32xbf16, #tpu.memory_space<vmem>>, %arg5: memref<2x32x256xf32, #tpu.memory_space<vmem>>, %arg6: memref<2x16x256xf32, #tpu.memory_space<vmem>>) attributes {dimension_semantics = [#tpu.dimension_semantics<parallel>, #tpu.dimension_semantics<parallel>], iteration_bounds = array<i64: 1, 1>, scalar_prefetch = 0 : i64, scratch_operands = 0 : i64, tpu.core_type = #tpu.core_type<tc>, window_params = [{pipeline_mode = #tpu.pipeline_mode<synchronous>, transform_indices = @transform_0, window_bounds = array<i64: 32, 1>}, {pipeline_mode = #tpu.pipeline_mode<synchronous>, transform_indices = @transform_1, window_bounds = array<i64: 32, 1>}, {pipeline_mode = #tpu.pipeline_mode<synchronous>, transform_indices = @transform_2, window_bounds = array<i64: 16, 32>}, {transform_indices = @transform_3, window_bounds = array<i64: 2, 32, 256>}, {transform_indices = @transform_4, window_bounds = array<i64: 2, 16, 256>}]} {
    %c0 = arith.constant 0 : index
    %c0_0 = arith.constant 0 : index
    %0 = vector.load %arg2[%c0, %c0_0] : memref<32x1xf32, #tpu.memory_space<vmem>>, vector<32x1xf32>
    %c0_1 = arith.constant 0 : index
    %c0_2 = arith.constant 0 : index
    %1 = vector.load %arg3[%c0_1, %c0_2] : memref<32x1xf32, #tpu.memory_space<vmem>>, vector<32x1xf32>
    %c0_3 = arith.constant 0 : index
    %c0_4 = arith.constant 0 : index
    %2 = vector.load %arg4[%c0_3, %c0_4] : memref<16x32xbf16, #tpu.memory_space<vmem>>, vector<16x32xbf16>
    %c0_5 = arith.constant 0 : index
    %c0_6 = arith.constant 0 : index
    %c0_7 = arith.constant 0 : index
    %3 = vector.load %arg5[%c0_5, %c0_6, %c0_7] : memref<2x32x256xf32, #tpu.memory_space<vmem>>, vector<1x32x256xf32>
    %4 = vector.shape_cast %3 : vector<1x32x256xf32> to vector<32x256xf32>
    %5 = vector.broadcast %0 : vector<32x1xf32> to vector<32x256xf32>
    %6 = arith.mulf %4, %5 : vector<32x256xf32>
    %7 = vector.broadcast %1 : vector<32x1xf32> to vector<32x256xf32>
    %8 = arith.addf %6, %7 : vector<32x256xf32>
    %cst = arith.constant 0.000000e+00 : f32
    %9 = vector.broadcast %cst : f32 to vector<32x256xf32>
    %10 = arith.maximumf %8, %9 : vector<32x256xf32>
    %11 = arith.truncf %10 : vector<32x256xf32> to vector<32x256xbf16>
    %cst_8 = arith.constant dense<0.000000e+00> : vector<16x256xf32>
    %12 = tpu.matmul %2, %11, %cst_8 {dimension_numbers = #tpu.dot_dimension_numbers<[1], [0], [0], [1], [0, 0, 1, 1], [], []>} : vector<16x32xbf16>, vector<32x256xbf16>, vector<16x256xf32> -> vector<16x256xf32>
    %c0_9 = arith.constant 0 : index
    %c0_10 = arith.constant 0 : index
    %c0_11 = arith.constant 0 : index
    %13 = vector.load %arg6[%c0_9, %c0_10, %c0_11] : memref<2x16x256xf32, #tpu.memory_space<vmem>>, vector<1x16x256xf32>
    %14 = vector.shape_cast %13 : vector<1x16x256xf32> to vector<16x256xf32>
    %15 = vector.shape_cast %12 : vector<16x256xf32> to vector<1x16x256xf32>
    tpu.vector_store %arg6[%c0_9, %c0_10, %c0_11], %15 {strides = array<i32>} : memref<2x16x256xf32, #tpu.memory_space<vmem>>, vector<1x16x256xf32>,
    %c1 = arith.constant 1 : index
    %c0_12 = arith.constant 0 : index
    %c0_13 = arith.constant 0 : index
    %16 = vector.load %arg5[%c1, %c0_12, %c0_13] : memref<2x32x256xf32, #tpu.memory_space<vmem>>, vector<1x32x256xf32>
    %17 = vector.shape_cast %16 : vector<1x32x256xf32> to vector<32x256xf32>
    %18 = vector.broadcast %0 : vector<32x1xf32> to vector<32x256xf32>
    %19 = arith.mulf %17, %18 : vector<32x256xf32>
    %20 = vector.broadcast %1 : vector<32x1xf32> to vector<32x256xf32>
    %21 = arith.addf %19, %20 : vector<32x256xf32>
    %cst_14 = arith.constant 0.000000e+00 : f32
    %22 = vector.broadcast %cst_14 : f32 to vector<32x256xf32>
    %23 = arith.maximumf %21, %22 : vector<32x256xf32>
    %24 = arith.truncf %23 : vector<32x256xf32> to vector<32x256xbf16>
    %cst_15 = arith.constant dense<0.000000e+00> : vector<16x256xf32>
    %25 = tpu.matmul %2, %24, %cst_15 {dimension_numbers = #tpu.dot_dimension_numbers<[1], [0], [0], [1], [0, 0, 1, 1], [], []>} : vector<16x32xbf16>, vector<32x256xbf16>, vector<16x256xf32> -> vector<16x256xf32>
    %c1_16 = arith.constant 1 : index
    %c0_17 = arith.constant 0 : index
    %c0_18 = arith.constant 0 : index
    %26 = vector.load %arg6[%c1_16, %c0_17, %c0_18] : memref<2x16x256xf32, #tpu.memory_space<vmem>>, vector<1x16x256xf32>
    %27 = vector.shape_cast %26 : vector<1x16x256xf32> to vector<16x256xf32>
    %28 = vector.shape_cast %25 : vector<16x256xf32> to vector<1x16x256xf32>
    tpu.vector_store %arg6[%c1_16, %c0_17, %c0_18], %28 {strides = array<i32>} : memref<2x16x256xf32, #tpu.memory_space<vmem>>, vector<1x16x256xf32>,
    return
  }
  func.func @transform_0(%arg0: i32, %arg1: i32) -> (i32, i32) {
    %c0_i32 = arith.constant 0 : i32
    %c0_i32_0 = arith.constant 0 : i32
    %c0_i32_1 = arith.constant 0 : i32
    return %c0_i32, %c0_i32_0 : i32, i32
  }
  func.func @transform_1(%arg0: i32, %arg1: i32) -> (i32, i32) {
    %c0_i32 = arith.constant 0 : i32
    %c0_i32_0 = arith.constant 0 : i32
    %c0_i32_1 = arith.constant 0 : i32
    return %c0_i32, %c0_i32_0 : i32, i32
  }
  func.func @transform_2(%arg0: i32, %arg1: i32) -> (i32, i32) {
    %c0_i32 = arith.constant 0 : i32
    %c0_i32_0 = arith.constant 0 : i32
    %c0_i32_1 = arith.constant 0 : i32
    return %c0_i32, %c0_i32_0 : i32, i32
  }
  func.func @transform_3(%arg0: i32, %arg1: i32) -> (i32, i32, i32) {
    %c0_i32 = arith.constant 0 : i32
    %c0_i32_0 = arith.constant 0 : i32
    return %arg0, %c0_i32, %arg1 : i32, i32, i32
  }
  func.func @transform_4(%arg0: i32, %arg1: i32) -> (i32, i32, i32) {
    %c0_i32 = arith.constant 0 : i32
    %c0_i32_0 = arith.constant 0 : i32
    return %arg0, %c0_i32, %arg1 : i32, i32, i32
  }
}

</mosaic_0001>

<llo_original>
// kernel: tpu_custom_call.1
$region0: #{tpu_custom_call.1}
  #allocation0 [shape = 'u32[]', space=smem, size = 0x4, offset = 0x4, fixed_abs, tag = 'smem constant byte address 0x4 - core index']
  #allocation1 [shape = 'u32[144,128]{1,0:T(1,128)}', space=vmem, size = 0x12000, scoped, tag = 'internal scratch']
  %s0 = inlined_call_operand.vmem [shape: f32[32,1], index: 0, kind: input, shape index: {}]
  %s1 = inlined_call_operand.vmem [shape: f32[32,1], index: 1, kind: input, shape index: {}]
  %s2 = inlined_call_operand.vmem [shape: bf16[16,32], index: 2, kind: input, shape index: {}]
  %s3 = inlined_call_operand.hbm [shape: f32[2,32,256], index: 3, kind: input, shape index: {}]
  %s4 = inlined_call_operand.hbm [shape: f32[2,16,256], index: 4, kind: output, shape index: {}]
  %s5 = sld [smem:[#allocation0]]
  $region30: #{tpu_custom_call.1} parent=0
    _
  %s7 = ssub.s32 1, %s5
  %s8 = scalar_select 0, %s7, %s5
  $region1: #{tpu_custom_call.1} parent=0
    #allocation2 [shape = 'u8[65536]{0}', space=vmem, size = 0x10000, scoped, tag = 'input window, operand 3, single buffered']
    #allocation3 [shape = 's32[1]{0}', space=sflag, size = 0x4, scoped, tag = 'scoped memory for tpu_custom_call.1']
    #allocation4 [shape = 's32[1]{0}', space=sflag, size = 0x4, scoped, tag = 'scoped memory for tpu_custom_call.1']
    #allocation5 [shape = 'u8[32768]{0}', space=vmem, size = 0x8000, scoped, tag = 'output window, operand 0, single buffered']
    %9 = vsyncpa [#allocation3], 0
    %10 = vsyncpa [#allocation4], 0
    // Predicated region
    $region2: #{tpu_custom_call.1} parent=1 // pred_check
      _
    $region3: #{tpu_custom_call.1} parent=1 // pred_check_branch
      %12 = sbr.rel (0) target = $region5
    $region4: #{tpu_custom_call.1} parent=1 // pred_region
      _
    $region5: #{tpu_custom_call.1} parent=1 // pred_fallthru
      _
    // Predicated region
    $region6: #{tpu_custom_call.1} parent=1 // pred_check
      _
    $region7: #{tpu_custom_call.1} parent=1 // pred_check_branch
      %14 = sbr.rel (0) target = $region9
    $region8: #{tpu_custom_call.1} parent=1 // pred_region
      _
    $region9: #{tpu_custom_call.1} parent=1 // pred_fallthru
      _
    // Predicated region
    $region10: #{tpu_custom_call.1} parent=1 // pred_check
      _
    $region11: #{tpu_custom_call.1} parent=1 // pred_check_branch
      %16 = sbr.rel (0) target = $region13
    $region12: #{tpu_custom_call.1} parent=1 // pred_region
      _
    $region13: #{tpu_custom_call.1} parent=1 // pred_fallthru
      _
    // Predicated region
    $region14: #{tpu_custom_call.1} parent=1 // pred_check
      _
    $region15: #{tpu_custom_call.1} parent=1 // pred_check_branch
      %18 = sbr.rel (0) target = $region17
    $region16: #{tpu_custom_call.1} parent=1 // pred_region
      %s20 = ssub.s32 2048, 2048
      %21 = vsyncadd [#allocation3], %s20
      %s22 = sshll.u32 [#allocation2], 4
      %s23 = int_to_ptr.vmem [resolvable:$true] %s22
      %28 = dma.hbm_to_vmem [thread:$0]  %s3, 2048, %s23, [#allocation3], 256, 256, 16
    $region17: #{tpu_custom_call.1} parent=1 // pred_fallthru
      _
    // Predicated region
    $region18: #{tpu_custom_call.1} parent=1 // pred_check
      _
    $region19: #{tpu_custom_call.1} parent=1 // pred_check_branch
      %30 = sbr.rel (0) target = $region21
    $region20: #{tpu_custom_call.1} parent=1 // pred_region
      %31 = dma.done [#allocation3], 2048
    $region21: #{tpu_custom_call.1} parent=1 // pred_fallthru
      _
    %v33 = vld [vmem:[%s0] sm:$0xff]
    %v34 = vld [vmem:[%s0 + $0x8] sm:$0xff]
    %v35 = vld [vmem:[%s0 + $0x10] sm:$0xff]
    %v36 = vld [vmem:[%s0 + $0x18] sm:$0xff]
    %v37 = vld [vmem:[%s1] sm:$0xff]
    %v38 = vld [vmem:[%s1 + $0x8] sm:$0xff]
    %v39 = vld [vmem:[%s1 + $0x10] sm:$0xff]
    %v40 = vld [vmem:[%s1 + $0x18] sm:$0xff]
    %v41 = vld [vmem:[%s2] sm:$0xf]
    %v42 = vld [vmem:[%s2 + $0x4] sm:$0xf]
    %v43 = vld [vmem:[#allocation2] sm:$0xff]
    %v44 = vld [vmem:[#allocation2 + $0x8] sm:$0xff]
    %v45 = vld [vmem:[#allocation2 + $0x10] sm:$0xff]
    %v46 = vld [vmem:[#allocation2 + $0x18] sm:$0xff]
    %v47 = vld [vmem:[#allocation2 + $0x20] sm:$0xff]
    %v48 = vld [vmem:[#allocation2 + $0x28] sm:$0xff]
    %v49 = vld [vmem:[#allocation2 + $0x30] sm:$0xff]
    %v50 = vld [vmem:[#allocation2 + $0x38] sm:$0xff]
    %52 = vset.pattern.permute.xlu0 0
    %53 = vperm.xlu0 %52, %v33
    %v54 = vpop.permute.xlu0 %53
    %57 = vset.pattern.permute.xlu0 0
    %58 = vperm.xlu0 %57, %v34
    %v59 = vpop.permute.xlu0 %58
    %62 = vset.pattern.permute.xlu0 0
    %63 = vperm.xlu0 %62, %v35
    %v64 = vpop.permute.xlu0 %63
    %67 = vset.pattern.permute.xlu0 0
    %68 = vperm.xlu0 %67, %v36
    %v69 = vpop.permute.xlu0 %68
    %v71 = vmul.f32 %v43, %v54
    %v72 = vmul.f32 %v44, %v54
    %v73 = vmul.f32 %v45, %v59
    %v74 = vmul.f32 %v46, %v59
    %v75 = vmul.f32 %v47, %v64
    %v76 = vmul.f32 %v48, %v64
    %v77 = vmul.f32 %v49, %v69
    %v78 = vmul.f32 %v50, %v69
    %80 = vset.pattern.permute.xlu0 0
    %81 = vperm.xlu0 %80, %v37
    %v82 = vpop.permute.xlu0 %81
    %85 = vset.pattern.permute.xlu0 0
    %86 = vperm.xlu0 %85, %v38
    %v87 = vpop.permute.xlu0 %86
    %90 = vset.pattern.permute.xlu0 0
    %91 = vperm.xlu0 %90, %v39
    %v92 = vpop.permute.xlu0 %91
    %95 = vset.pattern.permute.xlu0 0
    %96 = vperm.xlu0 %95, %v40
    %v97 = vpop.permute.xlu0 %96
    %v99 = vadd.f32 %v71, %v82
    %v100 = vadd.f32 %v72, %v82
    %v101 = vadd.f32 %v73, %v87
    %v102 = vadd.f32 %v74, %v87
    %v103 = vadd.f32 %v75, %v92
    %v104 = vadd.f32 %v76, %v92
    %v105 = vadd.f32 %v77, %v97
    %v106 = vadd.f32 %v78, %v97
    %v107 = vmax.f32 %v99, 0.0
    %v108 = vmax.f32 %v100, 0.0
    %v109 = vmax.f32 %v101, 0.0
    %v110 = vmax.f32 %v102, 0.0
    %v111 = vmax.f32 %v103, 0.0
    %v112 = vmax.f32 %v104, 0.0
    %v113 = vmax.f32 %v105, 0.0
    %v114 = vmax.f32 %v106, 0.0
    %v115 = vpack.c.bf16 %v109, %v107
    %v116 = vpack.c.bf16 %v110, %v108
    %v117 = vpack.c.bf16 %v113, %v111
    %v118 = vpack.c.bf16 %v114, %v112
    %v121 = vunpack.c.l.b16 %v41
    %v122 = vunpack.c.l.b16 %v42
    %v123 = vpack.c.b16 %v122, %v121
    %vm124 = vcmask 261120
    %v126 = vsel %vm124, %v123, 0
    %128 = vmatprep.subr.bf16.mxu0 %v116
    %129 = vmatpush1.bf16.msra.mxu0 %v115
    %130 = vmatprep.subr.bf16.mxu0 %v118
    %131 = vmatpush1.bf16.msra.mxu0 %v117
    %132 = vmatprep.subr.bf16.mxu0 0
    %133 = vmatpush1.bf16.msra.mxu0 0
    %134 = vmatprep.subr.bf16.mxu0 0
    %135 = vmatpush1.bf16.msra.mxu0 0
    %136 = vmatprep.subr.bf16.mxu0 0
    %137 = vmatpush1.bf16.msra.mxu0 0
    %138 = vmatprep.subr.bf16.mxu0 0
    %139 = vmatpush1.bf16.msra.mxu0 0
    %140 = vmatprep.subr.bf16.mxu0 0
    %141 = vmatpush1.bf16.msra.mxu0 0
    %142 = vmatprep.subr.bf16.mxu0 0
    %143 = vmatpush1.bf16.msra.mxu0 0
    %144 = vmatprep.subr.bf16.mxu0 0
    %145 = vmatpush1.bf16.msra.mxu0 0
    %146 = vmatprep.subr.bf16.mxu0 0
    %147 = vmatpush1.bf16.msra.mxu0 0
    %148 = vmatprep.subr.bf16.mxu0 0
    %149 = vmatpush1.bf16.msra.mxu0 0
    %150 = vmatprep.subr.bf16.mxu0 0
    %151 = vmatpush1.bf16.msra.mxu0 0
    %152 = vmatprep.subr.bf16.mxu0 0
    %153 = vmatpush1.bf16.msra.mxu0 0
    %154 = vmatprep.subr.bf16.mxu0 0
    %155 = vmatpush1.bf16.msra.mxu0 0
    %156 = vmatprep.subr.bf16.mxu0 0
    %157 = vmatpush1.bf16.msra.mxu0 0
    %158 = vmatprep.subr.bf16.mxu0 0
    %159 = vmatpush1.bf16.msra.mxu0 0
    %160 = vmatprep.mubr.bf16.mxu0 0
    %161 = vmatmul.mubr.bf16.gmra.mrb[0].mxu0 %v126
    %v162 = vpop.f32.mrb[0].mxu0
    %v163 = vadd.f32 0.0, %v162
    %v164 = vpop.f32.mrb[0].mxu0
    %v165 = vadd.f32 0.0, %v164
    %v166 = vpop.f32.mrb[0].mxu0
    %v167 = vadd.f32 0.0, %v166
    %v168 = vpop.f32.mrb[0].mxu0
    %v169 = vadd.f32 0.0, %v168
    %170 = vdwg.mxu0
    %171 = vst [vmem:[#allocation5] sm:$0xff] %v163
    %172 = vst [vmem:[#allocation5 + $0x8] sm:$0xff] %v165
    %173 = vst [vmem:[#allocation5 + $0x10] sm:$0xff] %v167
    %174 = vst [vmem:[#allocation5 + $0x18] sm:$0xff] %v169
    %s175 = scalar_lea.vmem [#allocation2], 64
    %v176 = vld [vmem:[%s175] sm:$0xff]
    %v177 = vld [vmem:[%s175 + $0x8] sm:$0xff]
    %v178 = vld [vmem:[%s175 + $0x10] sm:$0xff]
    %v179 = vld [vmem:[%s175 + $0x18] sm:$0xff]
    %v180 = vld [vmem:[%s175 + $0x20] sm:$0xff]
    %v181 = vld [vmem:[%s175 + $0x28] sm:$0xff]
    %v182 = vld [vmem:[%s175 + $0x30] sm:$0xff]
    %v183 = vld [vmem:[%s175 + $0x38] sm:$0xff]
    %v184 = vmul.f32 %v176, %v54
    %v185 = vmul.f32 %v177, %v54
    %v186 = vmul.f32 %v178, %v59
    %v187 = vmul.f32 %v179, %v59
    %v188 = vmul.f32 %v180, %v64
    %v189 = vmul.f32 %v181, %v64
    %v190 = vmul.f32 %v182, %v69
    %v191 = vmul.f32 %v183, %v69
    %v192 = vadd.f32 %v184, %v82
    %v193 = vadd.f32 %v185, %v82
    %v194 = vadd.f32 %v186, %v87
    %v195 = vadd.f32 %v187, %v87
    %v196 = vadd.f32 %v188, %v92
    %v197 = vadd.f32 %v189, %v92
    %v198 = vadd.f32 %v190, %v97
    %v199 = vadd.f32 %v191, %v97
    %v200 = vmax.f32 %v192, 0.0
    %v201 = vmax.f32 %v193, 0.0
    %v202 = vmax.f32 %v194, 0.0
    %v203 = vmax.f32 %v195, 0.0
    %v204 = vmax.f32 %v196, 0.0
    %v205 = vmax.f32 %v197, 0.0
    %v206 = vmax.f32 %v198, 0.0
    %v207 = vmax.f32 %v199, 0.0
    %v208 = vpack.c.bf16 %v202, %v200
    %v209 = vpack.c.bf16 %v203, %v201
    %v210 = vpack.c.bf16 %v206, %v204
    %v211 = vpack.c.bf16 %v207, %v205
    %212 = vmatprep.subr.bf16.mxu0 %v209
    %213 = vmatpush1.bf16.msra.mxu0 %v208
    %214 = vmatprep.subr.bf16.mxu0 %v211
    %215 = vmatpush1.bf16.msra.mxu0 %v210
    %216 = vmatprep.subr.bf16.mxu0 0
    %217 = vmatpush1.bf16.msra.mxu0 0
    %218 = vmatprep.subr.bf16.mxu0 0
    %219 = vmatpush1.bf16.msra.mxu0 0
    %220 = vmatprep.subr.bf16.mxu0 0
    %221 = vmatpush1.bf16.msra.mxu0 0
    %222 = vmatprep.subr.bf16.mxu0 0
    %223 = vmatpush1.bf16.msra.mxu0 0
    %224 = vmatprep.subr.bf16.mxu0 0
    %225 = vmatpush1.bf16.msra.mxu0 0
    %226 = vmatprep.subr.bf16.mxu0 0
    %227 = vmatpush1.bf16.msra.mxu0 0
    %228 = vmatprep.subr.bf16.mxu0 0
    %229 = vmatpush1.bf16.msra.mxu0 0
    %230 = vmatprep.subr.bf16.mxu0 0
    %231 = vmatpush1.bf16.msra.mxu0 0
    %232 = vmatprep.subr.bf16.mxu0 0
    %233 = vmatpush1.bf16.msra.mxu0 0
    %234 = vmatprep.subr.bf16.mxu0 0
    %235 = vmatpush1.bf16.msra.mxu0 0
    %236 = vmatprep.subr.bf16.mxu0 0
    %237 = vmatpush1.bf16.msra.mxu0 0
    %238 = vmatprep.subr.bf16.mxu0 0
    %239 = vmatpush1.bf16.msra.mxu0 0
    %240 = vmatprep.subr.bf16.mxu0 0
    %241 = vmatpush1.bf16.msra.mxu0 0
    %242 = vmatprep.subr.bf16.mxu0 0
    %243 = vmatpush1.bf16.msra.mxu0 0
    %244 = vmatprep.mubr.bf16.mxu0 0
    %245 = vmatmul.mubr.bf16.gmra.mrb[0].mxu0 %v126
    %v246 = vpop.f32.mrb[0].mxu0
    %v247 = vadd.f32 0.0, %v246
    %v248 = vpop.f32.mrb[0].mxu0
    %v249 = vadd.f32 0.0, %v248
    %v250 = vpop.f32.mrb[0].mxu0
    %v251 = vadd.f32 0.0, %v250
    %v252 = vpop.f32.mrb[0].mxu0
    %v253 = vadd.f32 0.0, %v252
    %254 = vdwg.mxu0
    %s255 = scalar_lea.vmem [#allocation5], 32
    %256 = vst [vmem:[%s255] sm:$0xff] %v247
    %257 = vst [vmem:[%s255 + $0x8] sm:$0xff] %v249
    %258 = vst [vmem:[%s255 + $0x10] sm:$0xff] %v251
    %259 = vst [vmem:[%s255 + $0x18] sm:$0xff] %v253
    // Predicated region
    $region22: #{tpu_custom_call.1} parent=1 // pred_check
      _
    $region23: #{tpu_custom_call.1} parent=1 // pred_check_branch
      %261 = sbr.rel (0) target = $region25
    $region24: #{tpu_custom_call.1} parent=1 // pred_region
      %s263 = ssub.s32 1024, 1024
      %264 = vsyncadd [#allocation4], %s263
      %s265 = sshll.u32 [#allocation5], 4
      %s266 = int_to_ptr.vmem [resolvable:$true] %s265
      %271 = dma.vmem_to_hbm [thread:$0]  %s266, 1024, %s4, [#allocation4], 256, 256, 16
    $region25: #{tpu_custom_call.1} parent=1 // pred_fallthru
      _
    // Predicated region
    $region26: #{tpu_custom_call.1} parent=1 // pred_check
      _
    $region27: #{tpu_custom_call.1} parent=1 // pred_check_branch
      %273 = sbr.rel (0) target = $region29
    $region28: #{tpu_custom_call.1} parent=1 // pred_region
      %274 = dma.done [#allocation4], 1024
    $region29: #{tpu_custom_call.1} parent=1 // pred_fallthru
      _
    %275 = vsyncpa [#allocation3], 1
    %276 = vsyncpa [#allocation4], 1

</llo_original>
